<compile_context>
chip_gen: v5e
topology: v5e:2x2
jax: 0.10.0
libtpu: 0.0.40
codegen_flags: <defaults>
</compile_context>

<pallas_src>
import functools

import jax
import jax.numpy as jnp
from jax.experimental import pallas as pl
from jax.experimental.pallas import tpu as pltpu


def _round_up(x, m):
    return ((x + m - 1) // m) * m


def _choose_lane_tile(L, C, itemsize):
    """Pick lane-tile TL and padded row count L_pad."""
    cap_bytes = 2 << 20                                   # ~2 MiB logits block (x2 double-buffered)
    cap = (cap_bytes // max(1, C * itemsize)) // 128 * 128
    cap = max(128, min(4096, cap))
    if L <= cap:
        return L, L                                       # one full-extent block per batch row
    return cap, _round_up(L, cap)                         # tile + pad the tail


def _focal_modulator(one_minus_pt, gamma):
    g = float(gamma)
    if g == 0.0:
        return jnp.ones_like(one_minus_pt)
    if g.is_integer() and 1 <= int(g) <= 8:
        r = one_minus_pt
        for _ in range(int(g) - 1):                       # gamma=2 -> single multiply
            r = r * one_minus_pt
        return r
    return jnp.power(one_minus_pt, g)                     # general (clamped base, no NaN)


def _focal_loss_kernel(x_ref, t_ref, w_ref, out_ref, *, gamma, ignore_index,
                       write_elem):
    """One (batch-row, lane-tile) block.

    x_ref: (1, C, TL) logits (native dtype) - classes on sublanes, rows on lanes
    t_ref: (1, 1, TL) int32 targets
    w_ref: (C, 1)     f32 per-class weights
    out_ref: (1, 1, TL) per-element loss            (write_elem=True)
             (1, 1, 128) per-row partial-sum accum  (write_elem=False)
    """
    x = x_ref[0].astype(jnp.float32)                      # (C, TL)
    t = t_ref[0]                                          # (1, TL)
    w = w_ref[...].astype(jnp.float32)                    # (C, 1)

    # numerically-stable softmax pieces over the class (sublane) axis
    m = jnp.max(x, axis=0, keepdims=True)                 # (1, TL)
    xm = x - m                                            # (C, TL)
    ex = jnp.exp(xm)                                      # (C, TL)  (the only big EUP cost)
    denom = jnp.sum(ex, axis=0, keepdims=True)            # (1, TL)

    # gather target-class quantities via a sublane one-hot (no dynamic gather)
    cls = jax.lax.broadcasted_iota(jnp.int32, x.shape, 0)  # (C, TL)
    onehot = (cls == t).astype(jnp.float32)                # (C, TL)
    xm_t = jnp.sum(onehot * xm, axis=0, keepdims=True)     # (1, TL)  x_t - m
    ex_t = jnp.sum(onehot * ex, axis=0, keepdims=True)     # (1, TL)  exp(x_t - m)
    w_t = jnp.sum(onehot * w, axis=0, keepdims=True)       # (1, TL)

    logpt_t = xm_t - jnp.log(denom)                        # target log-prob
    pt_t = ex_t * pl.reciprocal(denom)                     # reuse exponentials (no exp(logpt))
    one_minus = jnp.maximum(1.0 - pt_t, 0.0)               # clamp rounding above 1
    mod_t = _focal_modulator(one_minus, gamma) * logpt_t   # (1, TL)

    valid = t != ignore_index
    loss = jnp.where(valid, -(w_t * mod_t), 0.0)           # (1, TL)

    if write_elem:
        out_ref[0] = loss                                  # lane-dense store
    else:
        # per-batch-row running sum, resident across the lane-tile grid axis
        @pl.when(pl.program_id(1) == 0)
        def _():
            out_ref[...] = jnp.zeros_like(out_ref)

        lane = jax.lax.broadcasted_iota(jnp.int32, out_ref.shape, 2)
        out_ref[...] += jnp.where(lane == 0, jnp.sum(loss), 0.0)


def _run_focal_kernel(x3, t3, w2, *, gamma, ignore_index, TL, write_elem):
    Bdim, C, L_pad = x3.shape
    grid = (Bdim, L_pad // TL)

    kernel = functools.partial(_focal_loss_kernel, gamma=float(gamma),
                               ignore_index=int(ignore_index),
                               write_elem=write_elem)

    if write_elem:
        out_shape = jax.ShapeDtypeStruct((Bdim, 1, L_pad), jnp.float32)
        out_spec = pl.BlockSpec((1, 1, TL), lambda b, l: (b, 0, l))
        dims = ("parallel", "parallel")
    else:
        out_shape = jax.ShapeDtypeStruct((Bdim, 1, 128), jnp.float32)
        out_spec = pl.BlockSpec((1, 1, 128), lambda b, l: (b, 0, 0))
        dims = ("parallel", "arbitrary")                   # psum carried across lane tiles

    return pl.pallas_call(
        kernel,
        out_shape=out_shape,
        grid_spec=pltpu.PrefetchScalarGridSpec(
            num_scalar_prefetch=0,
            grid=grid,
            in_specs=[
                pl.BlockSpec((1, C, TL), lambda b, l: (b, 0, l)),
                pl.BlockSpec((1, 1, TL), lambda b, l: (b, 0, l)),
                pl.BlockSpec((C, 1), lambda b, l: (0, 0)),
            ],
            out_specs=out_spec,
        ),
        compiler_params=pltpu.CompilerParams(dimension_semantics=dims),
    )(x3, t3, w2)


def focal_loss(output, target, *, gamma=2.0, weight=None, reduction='mean',
               ignore_index=-100, mask=None):
    """output: (B, C, d1, ...) float; target: (B, d1, ...) int."""
    if reduction not in ('mean', 'sum', 'none'):
        raise ValueError("Invalid reduction. Must be 'sum' or 'mean' or 'none'.")

    B, C = output.shape[0], output.shape[1]
    spatial = output.shape[2:]

    if len(spatial) > 0:
        L = 1
        for d in spatial:
            L *= int(d)
        x3 = output.reshape(B, C, L)                       # free contiguous reshape
        t3 = target.reshape(B, 1, L).astype(jnp.int32)
    else:
        # (B, C) classification: put samples on the lane axis
        L = B
        x3 = jnp.transpose(output)[None]                   # (1, C, B)
        t3 = target.reshape(1, 1, B).astype(jnp.int32)

    TL, L_pad = _choose_lane_tile(L, C, x3.dtype.itemsize)
    if L_pad != L:
        x3 = jnp.pad(x3, ((0, 0), (0, 0), (0, L_pad - L)))
        t3 = jnp.pad(t3, ((0, 0), (0, 0), (0, L_pad - L)),
                     constant_values=int(ignore_index))    # padded rows contribute 0

    if weight is None:
        w2 = jnp.ones((C, 1), jnp.float32)
    else:
        w2 = jnp.asarray(weight).reshape(C, 1).astype(jnp.float32)

    n_elems = int(target.size)

    if reduction == 'mean' and mask is None:
        # fast path: no N-sized elementwise writeback, only per-row partial sums
        # NOTE: matches the module (nll_loss 'none' then .mean()): divide by N
        # even when a class weight is given.
        psum = _run_focal_kernel(x3, t3, w2, gamma=gamma,
                                 ignore_index=ignore_index, TL=TL,
                                 write_elem=False)
        return jnp.sum(psum) / n_elems

    loss_elem = _run_focal_kernel(x3, t3, w2, gamma=gamma,
                                  ignore_index=ignore_index, TL=TL,
                                  write_elem=True)
    loss_elem = loss_elem[:, 0, :L]
    if len(spatial) > 0:
        loss_full = loss_elem.reshape((B,) + spatial)
    else:
        loss_full = loss_elem.reshape((B,))

    if reduction == 'none':
        return loss_full
    if reduction == 'sum':
        if mask is not None:
            loss_full = loss_full * mask
        return jnp.sum(loss_full)
    # reduction == 'mean' with a mask: per-module masked mean over last dim, then mean
    per = jnp.sum(loss_full * mask, axis=-1) / jnp.sum(mask, axis=-1)
    return jnp.mean(per)


def _reference_focal_loss(output, target, gamma=2.0, weight=None,
                          reduction='mean', ignore_index=-100, mask=None):
    """Pure-JAX reference mirroring the PyTorch module."""
    logpt = jax.nn.log_softmax(output.astype(jnp.float32), axis=1)
    pt = jnp.exp(logpt)
    mod = (1.0 - pt) ** gamma * logpt
    C = output.shape[1]
    safe_t = jnp.where(target == ignore_index, 0, target)
    oh = jax.nn.one_hot(safe_t, C, axis=1, dtype=jnp.float32)
    picked = jnp.sum(oh * mod, axis=1)
    w = jnp.ones((C,), jnp.float32) if weight is None else jnp.asarray(weight, jnp.float32)
    wt = w[safe_t]
    loss = jnp.where(target == ignore_index, 0.0, -(wt * picked))
    if reduction == 'none':
        return loss
    if reduction == 'sum':
        if mask is not None:
            loss = loss * mask
        return jnp.sum(loss)
    if mask is not None:
        per = jnp.sum(loss * mask, axis=-1) / jnp.sum(mask, axis=-1)
        return jnp.mean(per)
    return jnp.mean(loss)


if __name__ == "__main__":
    key = jax.random.PRNGKey(0)
    B, C, L = 2, 8, 16                     # (batch, num_classes, sequence length)
    k1, k2, k3, k4, k5 = jax.random.split(key, 5)

    logits = jax.random.normal(k1, (B, C, L), dtype=jnp.float32)
    target = jax.random.randint(k2, (B, L), 0, C, dtype=jnp.int32)
    target = target.at[0, 3].set(-100).at[1, 7].set(-100)   # exercise ignore_index

    # default path: gamma=2, reduction='mean', no mask (partial-sum kernel)
    out_mean = jax.block_until_ready(focal_loss(logits, target))
    ref_mean = _reference_focal_loss(logits, target)
    assert jnp.allclose(out_mean, ref_mean, rtol=1e-5, atol=1e-6), (out_mean, ref_mean)

    # elementwise path (reduction='none')
    out_none = jax.block_until_ready(focal_loss(logits, target, reduction='none'))
    ref_none = _reference_focal_loss(logits, target, reduction='none')
    assert jnp.allclose(out_none, ref_none, rtol=1e-5, atol=1e-6)

    # weighted + masked mean path
    weight = jnp.linspace(0.5, 1.5, C, dtype=jnp.float32)
    mask = (jax.random.uniform(k3, (B, L)) > 0.3).astype(jnp.float32)
    out_m = jax.block_until_ready(
        focal_loss(logits, target, weight=weight, reduction='mean', mask=mask))
    ref_m = _reference_focal_loss(logits, target, weight=weight,
                                  reduction='mean', mask=mask)
    assert jnp.allclose(out_m, ref_m, rtol=1e-5, atol=1e-5), (out_m, ref_m)

    # plain (B, C) classification layout (no spatial dims)
    logits2 = jax.random.normal(k4, (4, C), dtype=jnp.float32)
    target2 = jax.random.randint(k5, (4,), 0, C, dtype=jnp.int32)
    out2 = jax.block_until_ready(focal_loss(logits2, target2))
    ref2 = _reference_focal_loss(logits2, target2)
    assert jnp.allclose(out2, ref2, rtol=1e-5, atol=1e-6), (out2, ref2)

    print("KERNEL_OK")
</pallas_src>

<mosaic_0001>
module attributes {stable_mosaic.version = 11 : i64} {
  func.func @_focal_loss_kernel(%arg0: i32, %arg1: i32, %arg2: memref<1x8x16xf32, #tpu.memory_space<vmem>>, %arg3: memref<1x1x16xi32, #tpu.memory_space<vmem>>, %arg4: memref<8x1xf32, #tpu.memory_space<vmem>>, %arg5: memref<1x1x128xf32, #tpu.memory_space<vmem>>) attributes {dimension_semantics = [#tpu.dimension_semantics<parallel>, #tpu.dimension_semantics<arbitrary>], iteration_bounds = array<i64: 2, 1>, scalar_prefetch = 0 : i64, scratch_operands = 0 : i64, tpu.core_type = #tpu.core_type<tc>, window_params = [{transform_indices = @transform_0, window_bounds = array<i64: 1, 8, 16>}, {transform_indices = @transform_1, window_bounds = array<i64: 1, 1, 16>}, {pipeline_mode = #tpu.pipeline_mode<synchronous>, transform_indices = @transform_2, window_bounds = array<i64: 8, 1>}, {transform_indices = @transform_3, window_bounds = array<i64: 1, 1, 128>}]} {
    %c0 = arith.constant 0 : index
    %c0_0 = arith.constant 0 : index
    %c0_1 = arith.constant 0 : index
    %0 = vector.load %arg2[%c0, %c0_0, %c0_1] : memref<1x8x16xf32, #tpu.memory_space<vmem>>, vector<1x8x16xf32>
    %1 = vector.shape_cast %0 : vector<1x8x16xf32> to vector<8x16xf32>
    %c0_2 = arith.constant 0 : index
    %c0_3 = arith.constant 0 : index
    %c0_4 = arith.constant 0 : index
    %2 = vector.load %arg3[%c0_2, %c0_3, %c0_4] : memref<1x1x16xi32, #tpu.memory_space<vmem>>, vector<1x1x16xi32>
    %3 = vector.shape_cast %2 : vector<1x1x16xi32> to vector<1x16xi32>
    %c0_5 = arith.constant 0 : index
    %c0_6 = arith.constant 0 : index
    %4 = vector.load %arg4[%c0_5, %c0_6] : memref<8x1xf32, #tpu.memory_space<vmem>>, vector<8x1xf32>
    %cst = arith.constant dense<0xFF800000> : vector<16xf32>
    %5 = vector.multi_reduction <maximumf>, %1, %cst [0] : vector<8x16xf32> to vector<16xf32>
    %6 = vector.shape_cast %5 : vector<16xf32> to vector<1x16xf32>
    %7 = vector.broadcast %6 : vector<1x16xf32> to vector<8x16xf32>
    %8 = arith.subf %1, %7 : vector<8x16xf32>
    %9 = math.exp %8 : vector<8x16xf32>
    %cst_7 = arith.constant dense<0.000000e+00> : vector<16xf32>
    %10 = vector.multi_reduction <add>, %9, %cst_7 [0] : vector<8x16xf32> to vector<16xf32>
    %11 = vector.shape_cast %10 : vector<16xf32> to vector<1x16xf32>
    %12 = tpu.iota {dimensions = array<i32: 0>} : vector<8x16xi32>
    %13 = vector.broadcast %3 : vector<1x16xi32> to vector<8x16xi32>
    %14 = arith.cmpi eq, %12, %13 : vector<8x16xi32>
    %15 = arith.extui %14 : vector<8x16xi1> to vector<8x16xi32>
    %16 = arith.sitofp %15 : vector<8x16xi32> to vector<8x16xf32>
    %17 = arith.mulf %16, %8 : vector<8x16xf32>
    %cst_8 = arith.constant dense<0.000000e+00> : vector<16xf32>
    %18 = vector.multi_reduction <add>, %17, %cst_8 [0] : vector<8x16xf32> to vector<16xf32>
    %19 = vector.shape_cast %18 : vector<16xf32> to vector<1x16xf32>
    %20 = arith.mulf %16, %9 : vector<8x16xf32>
    %cst_9 = arith.constant dense<0.000000e+00> : vector<16xf32>
    %21 = vector.multi_reduction <add>, %20, %cst_9 [0] : vector<8x16xf32> to vector<16xf32>
    %22 = vector.shape_cast %21 : vector<16xf32> to vector<1x16xf32>
    %23 = vector.broadcast %4 : vector<8x1xf32> to vector<8x16xf32>
    %24 = arith.mulf %16, %23 : vector<8x16xf32>
    %cst_10 = arith.constant dense<0.000000e+00> : vector<16xf32>
    %25 = vector.multi_reduction <add>, %24, %cst_10 [0] : vector<8x16xf32> to vector<16xf32>
    %26 = vector.shape_cast %25 : vector<16xf32> to vector<1x16xf32>
    %27 = math.log %11 : vector<1x16xf32>
    %28 = arith.subf %19, %27 : vector<1x16xf32>
    %29 = tpu.reciprocal %11 : vector<1x16xf32> -> vector<1x16xf32>
    %30 = arith.mulf %22, %29 : vector<1x16xf32>
    %cst_11 = arith.constant 1.000000e+00 : f32
    %31 = vector.broadcast %cst_11 : f32 to vector<1x16xf32>
    %32 = arith.subf %31, %30 : vector<1x16xf32>
    %cst_12 = arith.constant 0.000000e+00 : f32
    %33 = vector.broadcast %cst_12 : f32 to vector<1x16xf32>
    %34 = arith.maximumf %32, %33 : vector<1x16xf32>
    %35 = arith.mulf %34, %34 : vector<1x16xf32>
    %36 = arith.mulf %35, %28 : vector<1x16xf32>
    %c-100_i32 = arith.constant -100 : i32
    %37 = vector.broadcast %c-100_i32 : i32 to vector<1x16xi32>
    %38 = arith.cmpi ne, %3, %37 : vector<1x16xi32>
    %39 = arith.mulf %26, %36 : vector<1x16xf32>
    %cst_13 = arith.constant 0.000000e+00 : f32
    %40 = vector.broadcast %cst_13 : f32 to vector<1x16xf32>
    %41 = arith.subf %40, %39 : vector<1x16xf32>
    %cst_14 = arith.constant 0.000000e+00 : f32
    %42 = vector.broadcast %cst_14 : f32 to vector<1x16xf32>
    %43 = arith.select %38, %41, %42 : vector<1x16xi1>, vector<1x16xf32>
    %c0_i32 = arith.constant 0 : i32
    %44 = arith.cmpi eq, %arg1, %c0_i32 : i32
    %45 = arith.extui %44 : i1 to i32
    %c0_i32_15 = arith.constant 0 : i32
    %46 = arith.cmpi ne, %45, %c0_i32_15 : i32
    scf.if %46 {
      %cst_25 = arith.constant 0.000000e+00 : f32
      %60 = vector.broadcast %cst_25 : f32 to vector<1x1x128xf32>
      %c0_26 = arith.constant 0 : index
      %c0_27 = arith.constant 0 : index
      %c0_28 = arith.constant 0 : index
      %61 = vector.load %arg5[%c0_26, %c0_27, %c0_28] : memref<1x1x128xf32, #tpu.memory_space<vmem>>, vector<1x1x128xf32>
      tpu.vector_store %arg5[%c0_26, %c0_27, %c0_28], %60 {strides = array<i32>} : memref<1x1x128xf32, #tpu.memory_space<vmem>>, vector<1x1x128xf32>,
    } else {
    }
    %47 = tpu.iota {dimensions = array<i32: 2>} : vector<1x1x128xi32>
    %c0_16 = arith.constant 0 : index
    %c0_17 = arith.constant 0 : index
    %c0_18 = arith.constant 0 : index
    %48 = vector.load %arg5[%c0_16, %c0_17, %c0_18] : memref<1x1x128xf32, #tpu.memory_space<vmem>>, vector<1x1x128xf32>
    %c0_i32_19 = arith.constant 0 : i32
    %49 = vector.broadcast %c0_i32_19 : i32 to vector<1x1x128xi32>
    %50 = arith.cmpi eq, %47, %49 : vector<1x1x128xi32>
    %51 = vector.shape_cast %43 : vector<1x16xf32> to vector<1x1x16xf32>
    %cst_20 = arith.constant dense<0.000000e+00> : vector<1xf32>
    %52 = vector.multi_reduction <add>, %51, %cst_20 [1, 2] : vector<1x1x16xf32> to vector<1xf32>
    %53 = vector.shape_cast %52 : vector<1xf32> to vector<1x1x1xf32>
    %54 = vector.extract %53[0, 0, 0] : f32 from vector<1x1x1xf32>
    %cst_21 = arith.constant 0.000000e+00 : f32
    %55 = vector.broadcast %54 : f32 to vector<1x1x128xf32>
    %56 = vector.broadcast %cst_21 : f32 to vector<1x1x128xf32>
    %57 = arith.select %50, %55, %56 : vector<1x1x128xi1>, vector<1x1x128xf32>
    %58 = arith.addf %48, %57 : vector<1x1x128xf32>
    %c0_22 = arith.constant 0 : index
    %c0_23 = arith.constant 0 : index
    %c0_24 = arith.constant 0 : index
    %59 = vector.load %arg5[%c0_22, %c0_23, %c0_24] : memref<1x1x128xf32, #tpu.memory_space<vmem>>, vector<1x1x128xf32>
    tpu.vector_store %arg5[%c0_22, %c0_23, %c0_24], %58 {strides = array<i32>} : memref<1x1x128xf32, #tpu.memory_space<vmem>>, vector<1x1x128xf32>,
    return
  }
  func.func @transform_0(%arg0: i32, %arg1: i32) -> (i32, i32, i32) {
    %c0_i32 = arith.constant 0 : i32
    %c0_i32_0 = arith.constant 0 : i32
    return %arg0, %c0_i32, %arg1 : i32, i32, i32
  }
  func.func @transform_1(%arg0: i32, %arg1: i32) -> (i32, i32, i32) {
    %c0_i32 = arith.constant 0 : i32
    %c0_i32_0 = arith.constant 0 : i32
    return %arg0, %c0_i32, %arg1 : i32, i32, i32
  }
  func.func @transform_2(%arg0: i32, %arg1: i32) -> (i32, i32) {
    %c0_i32 = arith.constant 0 : i32
    %c0_i32_0 = arith.constant 0 : i32
    %c0_i32_1 = arith.constant 0 : i32
    return %c0_i32, %c0_i32_0 : i32, i32
  }
  func.func @transform_3(%arg0: i32, %arg1: i32) -> (i32, i32, i32) {
    %c0_i32 = arith.constant 0 : i32
    %c0_i32_0 = arith.constant 0 : i32
    %c0_i32_1 = arith.constant 0 : i32
    return %arg0, %c0_i32, %c0_i32_0 : i32, i32, i32
  }
}

</mosaic_0001>

<llo_original>
// kernel: tpu_custom_call.1
$region0: #{tpu_custom_call.1}
  #allocation0 [shape = 'u32[]', space=smem, size = 0x4, offset = 0x4, fixed_abs, tag = 'smem constant byte address 0x4 - core index']
  #allocation1 [shape = 'u32[72,128]{1,0:T(1,128)}', space=vmem, size = 0x9000, scoped, tag = 'internal scratch']
  %s0 = inlined_call_operand.hbm [shape: f32[2,8,16], index: 0, kind: input, shape index: {}]
  %s1 = inlined_call_operand.vmem [shape: s32[2,1,16], index: 1, kind: input, shape index: {}]
  %s2 = inlined_call_operand.vmem [shape: f32[8,1], index: 2, kind: input, shape index: {}]
  %s3 = inlined_call_operand.hbm [shape: f32[2,1,128], index: 3, kind: output, shape index: {}]
  %s4 = sld [smem:[#allocation0]]
  $region53: #{tpu_custom_call.1} parent=0
    _
  %s6 = ssub.s32 1, %s4
  %s7 = scalar_select 0, %s6, %s4
  $region1: #{tpu_custom_call.1} parent=0
    #allocation2 [shape = 'u8[8192]{0}', space=vmem, size = 0x2000, scoped, tag = 'input window, operand 0']
    #allocation3 [shape = 's32[2]{0}', space=sflag, size = 0x8, scoped, tag = 'scoped memory for tpu_custom_call.1']
    #allocation4 [shape = 's32[2]{0}', space=sflag, size = 0x8, scoped, tag = 'scoped memory for tpu_custom_call.1']
    #allocation5 [shape = 'u8[1024]{0}', space=vmem, size = 0x400, scoped, tag = 'output window, operand 0']
    %8 = vsyncpa [#allocation3], 0
    %s9 = scalar_lea.sflag [#allocation3], 1
    %10 = vsyncpa %s9, 0
    %11 = vsyncpa [#allocation4], 0
    %s12 = scalar_lea.sflag [#allocation4], 1
    %13 = vsyncpa %s12, 0
    loop: start=0, step=1, limit=4
    $region2: #{tpu_custom_call.1} parent=1 // loop_pre_header
      _
    $region3: #{tpu_custom_call.1} parent=1 // loop_header
      %s15 = sphi 0, %s19
      %p16 = scmp.ge.s32.totalorder %s15, 4
      %s22 = sphi 0, %s34
      %s23 = sphi 0, %s30
      %s24 = sphi 0, %s22
      %s25 = sphi 0, %s23
      %s26 = sphi 0, %s24
      %s27 = sphi 0, %s25
      %s39 = sphi 0, %s41
      %s42 = sphi 0, %s39
      %s43 = sphi 0, %s42
      %s59 = sphi 0, %s43
      %s67 = sphi 0, %s69
      %s70 = sphi 0, %s67
      %s71 = sphi 0, %s70
      %s87 = sphi 0, %s71
      %s91 = sphi 0, %s91
      %s93 = sphi 0, %s91
      %s94 = sphi 0, %s93
      %s108 = sphi 0, %s94
      %s114 = sphi 0, %s116
      %s117 = sphi 0, %s114
      %s118 = sphi 0, %s117
      %s134 = sphi 0, %s118
    $region4: #{tpu_custom_call.1} parent=1 // loop_header_branch
      %18 = sbr.rel (%p16) target = $region8
    $region5: #{tpu_custom_call.1} parent=1 // loop_body
      %s20 = ssub.s32 %s15, 1
      %s21 = ssub.s32 %s15, 2
      %s28 = sadd.s32 1, %s23
      %p29 = scmp.ge.s32.totalorder %s28, 1
      %s30 = scalar_select %p29, 0, %s28
      %s31 = sadd.s32 1, %s22
      %s32 = scalar_select %p29, %s31, %s22
      %p33 = scmp.ge.s32.totalorder %s32, 2
      %s34 = scalar_select %p33, 0, %s32
      %s35 = ssub.s32 %s22, %s34
      %s36 = ssub.s32 %s23, %s30
      %s37 = sor.u32 %s35, %s36
      %p38 = scmp.eq.s32.totalorder %s37, 0
      %s40 = sadd.s32 %s39, 1
      %s41 = scalar_select %p38, %s39, %s40
      %p44 = pneg %p38
      %p45 = scmp.eq.s32.totalorder %s15, 1
      %p46 = por %p44, %p45
      %p47 = scmp.ne.s32.totalorder %s39, %s42
      %p48 = scmp.eq.s32.totalorder %s15, 0
      %p49 = por %p47, %p48
      %p50 = scmp.ne.s32.totalorder %s39, %s42
      %p51 = scmp.eq.s32.totalorder %s20, 1
      %p52 = por %p50, %p51
      %p53 = scmp.ne.s32.totalorder %s42, %s43
      %p54 = scmp.eq.s32.totalorder %s20, 0
      %p55 = por %p53, %p54
      %p56 = scmp.ne.s32.totalorder %s42, %s43
      %p57 = scmp.eq.s32.totalorder %s21, 1
      %p58 = por %p56, %p57
      %p60 = scmp.ne.s32.totalorder %s43, %s59
      %p61 = scmp.eq.s32.totalorder %s21, 0
      %p62 = por %p60, %p61
      %s63 = ssub.s32 %s22, %s34
      %s64 = ssub.s32 %s23, %s30
      %s65 = sor.u32 %s63, %s64
      %p66 = scmp.eq.s32.totalorder %s65, 0
      %s68 = sadd.s32 %s67, 1
      %s69 = scalar_select %p66, %s67, %s68
      %p72 = pneg %p66
      %p73 = scmp.eq.s32.totalorder %s15, 1
      %p74 = por %p72, %p73
      %p75 = scmp.ne.s32.totalorder %s67, %s70
      %p76 = scmp.eq.s32.totalorder %s15, 0
      %p77 = por %p75, %p76
      %p78 = scmp.ne.s32.totalorder %s67, %s70
      %p79 = scmp.eq.s32.totalorder %s20, 1
      %p80 = por %p78, %p79
      %p81 = scmp.ne.s32.totalorder %s70, %s71
      %p82 = scmp.eq.s32.totalorder %s20, 0
      %p83 = por %p81, %p82
      %p84 = scmp.ne.s32.totalorder %s70, %s71
      %p85 = scmp.eq.s32.totalorder %s21, 1
      %p86 = por %p84, %p85
      %p88 = scmp.ne.s32.totalorder %s71, %s87
      %p89 = scmp.eq.s32.totalorder %s21, 0
      %p90 = por %p88, %p89
      %s92 = sadd.s32 %s91, 1
      %p95 = scmp.eq.s32.totalorder %s15, 1
      %p96 = scmp.ne.s32.totalorder %s91, %s93
      %p97 = scmp.eq.s32.totalorder %s15, 0
      %p98 = por %p96, %p97
      %p99 = scmp.ne.s32.totalorder %s91, %s93
      %p100 = scmp.eq.s32.totalorder %s20, 1
      %p101 = por %p99, %p100
      %p102 = scmp.ne.s32.totalorder %s93, %s94
      %p103 = scmp.eq.s32.totalorder %s20, 0
      %p104 = por %p102, %p103
      %p105 = scmp.ne.s32.totalorder %s93, %s94
      %p106 = scmp.eq.s32.totalorder %s21, 1
      %p107 = por %p105, %p106
      %p109 = scmp.ne.s32.totalorder %s94, %s108
      %p110 = scmp.eq.s32.totalorder %s21, 0
      %p111 = por %p109, %p110
      %s112 = ssub.s32 %s22, %s34
      %p113 = scmp.eq.s32.totalorder %s112, 0
      %s115 = sadd.s32 %s114, 1
      %s116 = scalar_select %p113, %s114, %s115
      %p119 = pneg %p113
      %p120 = scmp.eq.s32.totalorder %s15, 1
      %p121 = por %p119, %p120
      %p122 = scmp.ne.s32.totalorder %s114, %s117
      %p123 = scmp.eq.s32.totalorder %s15, 0
      %p124 = por %p122, %p123
      %p125 = scmp.ne.s32.totalorder %s114, %s117
      %p126 = scmp.eq.s32.totalorder %s20, 1
      %p127 = por %p125, %p126
      %p128 = scmp.ne.s32.totalorder %s117, %s118
      %p129 = scmp.eq.s32.totalorder %s20, 0
      %p130 = por %p128, %p129
      %p131 = scmp.ne.s32.totalorder %s117, %s118
      %p132 = scmp.eq.s32.totalorder %s21, 1
      %p133 = por %p131, %p132
      %p135 = scmp.ne.s32.totalorder %s118, %s134
      %p136 = scmp.eq.s32.totalorder %s21, 0
      %p137 = por %p135, %p136
      %p138 = scmp.le.s32.totalorder 1, %s15
      %p139 = scmp.lt.s32.totalorder %s15, 3
      %p140 = pnand %p138, %p139
      %p141 = pneg %p140
      // Predicated region
      $region9: #{tpu_custom_call.1} parent=5 // pred_check
        _
      $region10: #{tpu_custom_call.1} parent=5 // pred_check_branch
        %143 = sbr.rel (%p140) target = $region12
      $region11: #{tpu_custom_call.1} parent=5 // pred_region
        %s144 = ssub.s32 %s15, 1
        // Predicated region
        $region13: #{tpu_custom_call.1} parent=11 // pred_check
          %p145 = pneg %p104
        $region14: #{tpu_custom_call.1} parent=11 // pred_check_branch
          %147 = sbr.rel (%p145) target = $region16
        $region15: #{tpu_custom_call.1} parent=11 // pred_region
          _
        $region16: #{tpu_custom_call.1} parent=11 // pred_fallthru
          _
      $region12: #{tpu_custom_call.1} parent=5 // pred_fallthru
        _
      %p148 = scmp.lt.s32.totalorder %s15, 2
      // Predicated region
      $region17: #{tpu_custom_call.1} parent=5 // pred_check
        %p149 = pneg %p148
      $region18: #{tpu_custom_call.1} parent=5 // pred_check_branch
        %151 = sbr.rel (%p149) target = $region20
      $region19: #{tpu_custom_call.1} parent=5 // pred_region
        // Predicated region
        $region21: #{tpu_custom_call.1} parent=19 // pred_check
          %p152 = pneg %p49
        $region22: #{tpu_custom_call.1} parent=19 // pred_check_branch
          %154 = sbr.rel (%p152) target = $region24
        $region23: #{tpu_custom_call.1} parent=19 // pred_region
          %s155 = sand.u32 %s39, 1
          %s156 = scalar_lea.sflag [#allocation3], %s155
          %s157 = sand.u32 %s39, 1
          %s158 = smul.addr %s157, 8
          %s159 = scalar_lea.vmem [#allocation2], %s158
          %161 = vsyncadd %s156, 0
          %s162 = sadd.s32 %s23, %s22
          %s163 = smul.addr %s162, 8
          %s164 = scalar_lea.hbm %s0, %s163
          %s166 = sshll.u32 %s164, 4
          %s167 = int_to_ptr.hbm [resolvable:$true] %s166
          %s168 = sshll.u32 %s159, 4
          %s169 = int_to_ptr.vmem [resolvable:$true] %s168
          %171 = dma.hbm_to_vmem [thread:$0]  %s167, 128, %s169, %s156
        $region24: #{tpu_custom_call.1} parent=19 // pred_fallthru
          _
        // Predicated region
        $region25: #{tpu_custom_call.1} parent=19 // pred_check
          %p172 = pneg %p77
        $region26: #{tpu_custom_call.1} parent=19 // pred_check_branch
          %174 = sbr.rel (%p172) target = $region28
        $region27: #{tpu_custom_call.1} parent=19 // pred_region
          %p175 = scmp.lt.s32.totalorder %s22, 1
          %s176 = scalar_select %p175, %s22, 1
          %p177 = scmp.lt.s32.totalorder %s23, 0
          %s178 = scalar_select %p177, %s23, 0
          %s179 = sadd.s32 %s178, %s176
          %s180 = scalar_lea.vmem %s1, %s179
        $region28: #{tpu_custom_call.1} parent=19 // pred_fallthru
          _
      $region20: #{tpu_custom_call.1} parent=5 // pred_fallthru
        _
      %p181 = scmp.le.s32.totalorder 1, %s15
      %p182 = scmp.lt.s32.totalorder %s15, 3
      %p183 = pnand %p181, %p182
      %p184 = pneg %p183
      // Predicated region
      $region29: #{tpu_custom_call.1} parent=5 // pred_check
        _
      $region30: #{tpu_custom_call.1} parent=5 // pred_check_branch
        %186 = sbr.rel (%p183) target = $region32
      $region31: #{tpu_custom_call.1} parent=5 // pred_region
        %s187 = ssub.s32 %s15, 1
        %s188 = sand.u32 %s42, 1
        %s189 = scalar_lea.sflag [#allocation3], %s188
        %s190 = sand.u32 %s42, 1
        %s191 = smul.addr %s190, 8
        %s192 = scalar_lea.vmem [#allocation2], %s191
        // Predicated region
        $region33: #{tpu_custom_call.1} parent=31 // pred_check
          %p193 = pneg %p55
        $region34: #{tpu_custom_call.1} parent=31 // pred_check_branch
          %195 = sbr.rel (%p193) target = $region36
        $region35: #{tpu_custom_call.1} parent=31 // pred_region
          %197 = dma.done %s189, 128
        $region36: #{tpu_custom_call.1} parent=31 // pred_fallthru
          _
        %s198 = sand.u32 %s42, 1
        %s199 = scalar_lea.sflag [#allocation3], %s198
        %s200 = sand.u32 %s42, 1
        %s201 = smul.addr %s200, 8
        %s202 = scalar_lea.vmem [#allocation2], %s201
        %p203 = pneg %p55
        %p204 = pneg %p52
        %p205 = scmp.lt.s32.totalorder %s24, 1
        %s206 = scalar_select %p205, %s24, 1
        %p207 = scmp.lt.s32.totalorder %s25, 0
        %s208 = scalar_select %p207, %s25, 0
        %s209 = sadd.s32 %s208, %s206
        %s210 = scalar_lea.vmem %s1, %s209
        %p211 = pneg %p83
        %p212 = pneg %p80
        %p213 = pneg %p104
        %p214 = pneg %p101
        %p215 = pneg %p130
        %p216 = pneg %p127
        %s217 = sand.u32 %s117, 1
        %s218 = scalar_lea.sflag [#allocation4], %s217
        %s219 = sand.u32 %s117, 1
        %s220 = scalar_lea.vmem [#allocation5], %s219
        %p221 = scmp.lt.s32.totalorder %s24, 1
        %s222 = scalar_select %p221, %s24, 1
        %p223 = scmp.lt.s32.totalorder %s25, 0
        %s224 = scalar_select %p223, %s25, 0
        %s225 = sadd.s32 %s224, %s222
        %s226 = scalar_lea.vmem %s1, %s225
        %v227 = vld [vmem:[%s192] sm:$0xff]
        %v228 = vld [vmem:[%s226] sm:$0x1]
        %v229 = vld [vmem:[%s2] sm:$0xff]
        %vm230 = vcmask 130048
        %v231 = vsel %vm230, %v227, -inf
        %v232 = vrot.slane %v231, 4
        %v233 = vmax.f32 %v231, %v232
        %v234 = vrot.slane %v233, 2
        %v235 = vmax.f32 %v233, %v234
        %v236 = vrot.slane %v235, 1
        %v237 = vmax.f32 %v235, %v236
        %v238 = vsub.f32 %v227, %v237
        %v239 = vmul.f32 %v238, 1.442695
        %v240 = vpow.pop %v239
        %v241 = vsel %vm230, %v240, 0.0
        %v242 = vrot.slane %v241, 4
        %v243 = vadd.f32 %v241, %v242
        %v244 = vrot.slane %v243, 2
        %v245 = vadd.f32 %v243, %v244
        %v246 = vrot.slane %v245, 1
        %v247 = vadd.f32 %v245, %v246
        %v248 = vlaneseq
        %v249 = vshrl.u32 %v248, 7
        %v250 = vperm.slane %v228, 0
        %vm251 = vcmp.eq.s32.totalorder %v249, %v250
        %v252 = vsel %vm251, 1, 0
        %v253 = vcvt.s32.f32 %v252
        %v254 = vmul.f32 %v253, %v238
        %v255 = vsel %vm230, %v254, 0.0
        %v256 = vrot.slane %v255, 4
        %v257 = vadd.f32 %v255, %v256
        %v258 = vrot.slane %v257, 2
        %v259 = vadd.f32 %v257, %v258
        %v260 = vrot.slane %v259, 1
        %v261 = vadd.f32 %v259, %v260
        %v262 = vmul.f32 %v253, %v240
        %v263 = vsel %vm230, %v262, 0.0
        %v264 = vrot.slane %v263, 4
        %v265 = vadd.f32 %v263, %v264
        %v266 = vrot.slane %v265, 2
        %v267 = vadd.f32 %v265, %v266
        %v268 = vrot.slane %v267, 1
        %v269 = vadd.f32 %v267, %v268
        %271 = vset.pattern.permute.xlu0 0
        %272 = vperm.xlu0 %271, %v229
        %v273 = vpop.permute.xlu0 %272
        %v275 = vmul.f32 %v253, %v273
        %v276 = vsel %vm230, %v275, 0.0
        %v277 = vrot.slane %v276, 4
        %v278 = vadd.f32 %v276, %v277
        %v279 = vrot.slane %v278, 2
        %v280 = vadd.f32 %v278, %v279
        %v281 = vrot.slane %v280, 1
        %v282 = vadd.f32 %v280, %v281
        %v283 = vlog2.pop %v247
        %v284 = vmul.f32 %v283, 0.6931472
        %v285 = vsub.f32 %v261, %v284
        %v286 = vrcp.pop %v247
        %v287 = vmul.f32 %v247, %v286
        %v288 = vsub.f32 1.0, %v287
        %v289 = vmul.f32 %v286, %v288
        %v290 = vadd.f32 %v286, %v289
        %vm291 = vweird.f32 %v247
        %vm292 = vweird.f32 %v286
        %vm293 = vmor %vm291, %vm292
        %v294 = vsel %vm293, %v286, %v290
        %v295 = vand.u32 2147483647, %v247
        %vm296 = vcmp.eq.f32.partialorder %v295, 8.507059e+37
        %v297 = vand.u32 %v247, 2147483648
        %v298 = vor.u32 1.1754944e-38, %v297
        %v299 = vsel %vm296, %v298, %v294
        %v300 = vmul.f32 %v269, %v299
        %v301 = vsub.f32 1.0, %v300
        %v302 = vmax.f32 %v301, 0.0
        %v303 = vmul.f32 %v302, %v302
        %v304 = vmul.f32 %v303, %v285
        %vm305 = vcmp.ne.s32.totalorder %v228, 4294967196
        %v306 = vmul.f32 %v282, %v304
        %v307 = vsub.f32 0.0, %v306
        %v308 = vsel %vm305, %v307, 0.0
        %p309 = scmp.eq.s32.totalorder %s25, 0
        // Predicated region
        $region37: #{tpu_custom_call.1} parent=31 // pred_check
          %p310 = pneg %p309
        $region38: #{tpu_custom_call.1} parent=31 // pred_check_branch
          %312 = sbr.rel (%p310) target = $region40
        $region39: #{tpu_custom_call.1} parent=31 // pred_region
          %313 = vst [vmem:[%s220] sm:$0x1] 0.0
        $region40: #{tpu_custom_call.1} parent=31 // pred_fallthru
          _
        %v314 = vlaneseq
        %v315 = vand.u32 %v314, 127
        %v316 = vld [vmem:[%s220] sm:$0x1]
        %vm317 = vcmp.eq.s32.totalorder %v315, 0
        %vm318 = vcmask 122880
        %v319 = vsel %vm318, %v308, 0.0
        %320 = vadd.xlane.f32.xlu0 %v319
        %v321 = vpop.xlane.xlu0 %320
        %v322 = vrot.slane %v321, 4
        %v323 = vadd.f32 %v321, %v322
        %v324 = vrot.slane %v323, 2
        %v325 = vadd.f32 %v323, %v324
        %v326 = vrot.slane %v325, 1
        %v327 = vadd.f32 %v325, %v326
        %s328 = vtos %v327
        %v329 = vstv %s328
        %v330 = vsel %vm317, %v329, 0.0
        %v331 = vadd.f32 %v316, %v330
        %332 = vst [vmem:[%s220] sm:$0x1] %v331
        %s333 = sand.u32 %s117, 1
        %s334 = scalar_lea.sflag [#allocation4], %s333
        %s335 = sand.u32 %s117, 1
        %s336 = scalar_lea.vmem [#allocation5], %s335
        // Predicated region
        $region41: #{tpu_custom_call.1} parent=31 // pred_check
          %p337 = pneg %p127
        $region42: #{tpu_custom_call.1} parent=31 // pred_check_branch
          %339 = sbr.rel (%p337) target = $region44
        $region43: #{tpu_custom_call.1} parent=31 // pred_region
          %341 = vsyncadd %s334, 0
          %s342 = scalar_lea.hbm %s3, %s24
          %s344 = sshll.u32 %s336, 4
          %s345 = int_to_ptr.vmem [resolvable:$true] %s344
          %s346 = sshll.u32 %s342, 4
          %s347 = int_to_ptr.hbm [resolvable:$true] %s346
          %349 = dma.vmem_to_hbm [thread:$0]  %s345, 16, %s347, %s334
        $region44: #{tpu_custom_call.1} parent=31 // pred_fallthru
          _
      $region32: #{tpu_custom_call.1} parent=5 // pred_fallthru
        _
      %p350 = scmp.le.s32.totalorder 2, %s15
      // Predicated region
      $region45: #{tpu_custom_call.1} parent=5 // pred_check
        %p351 = pneg %p350
      $region46: #{tpu_custom_call.1} parent=5 // pred_check_branch
        %353 = sbr.rel (%p351) target = $region48
      $region47: #{tpu_custom_call.1} parent=5 // pred_region
        %s354 = ssub.s32 %s15, 2
        // Predicated region
        $region49: #{tpu_custom_call.1} parent=47 // pred_check
          %p355 = pneg %p133
        $region50: #{tpu_custom_call.1} parent=47 // pred_check_branch
          %357 = sbr.rel (%p355) target = $region52
        $region51: #{tpu_custom_call.1} parent=47 // pred_region
          %s358 = sand.u32 %s118, 1
          %s359 = scalar_lea.sflag [#allocation4], %s358
          %s360 = sand.u32 %s118, 1
          %s361 = scalar_lea.vmem [#allocation5], %s360
          %363 = dma.done %s359, 16
        $region52: #{tpu_custom_call.1} parent=47 // pred_fallthru
          _
      $region48: #{tpu_custom_call.1} parent=5 // pred_fallthru
        _
    $region6: #{tpu_custom_call.1} parent=1 // loop_footer
      %s19 = sadd.s32 1, %s15
    $region7: #{tpu_custom_call.1} parent=1 // loop_footer_branch
      %14 = sbr.rel target = $region3
    $region8: #{tpu_custom_call.1} parent=1 // loop_exit
      _
    %364 = vsyncpa [#allocation3], 1
    %s365 = scalar_lea.sflag [#allocation3], 1
    %366 = vsyncpa %s365, 1
    %367 = vsyncpa [#allocation4], 1
    %s368 = scalar_lea.sflag [#allocation4], 1
    %369 = vsyncpa %s368, 1

</llo_original>
